<compile_context>
chip_gen: v5e
topology: v5e:2x2
jax: 0.10.0
libtpu: 0.0.40
codegen_flags: <defaults>
</compile_context>

<pallas_src>
import functools
import math

import jax
import jax.numpy as jnp
from jax.experimental import pallas as pl
from jax.experimental.pallas import tpu as pltpu


def _pos_emb_kernel(x_ref, tab_ref, o_ref, *, g):
    # x_ref:   (tb, g)  f32  -- g original rows packed per output row
    # tab_ref: (3, L)   f32  -- row 0: freqs (tiled g times over [f, f]),
    #                           row 1: sin-select mask (1.0 sin / 0.0 cos),
    #                           row 2: group id (which x column feeds this lane)
    # o_ref:   (tb, L)  f32  -- lane-dense packed output (L = g * dim)
    freqs = tab_ref[0:1, :]            # (1, L) static slice views
    sin_sel = tab_ref[1:2, :]          # (1, L)

    # Expand x across lanes: lane l takes x column (l // dim).  For g == 1 the
    # (tb, 1) column simply lane-broadcasts in the multiply below.  For g > 1
    # a short exact select chain does the expansion on the (idle) VPU.
    xl = x_ref[:, 0:1]                 # (tb, 1)
    if g > 1:
        grp = tab_ref[2:3, :]          # (1, L), exact small integers in f32
        for k in range(1, g):          # static unroll, g <= 32
            xl = jnp.where(grp == float(k), x_ref[:, k:k + 1], xl)

    emb = xl * freqs                   # (tb, L) via broadcast (VPU)
    # Bit-exact sin/cos (matches torch.cat([sin, cos])); single unmasked
    # full-width store -- no mid-lane-tile partial writes.
    o_ref[...] = jnp.where(sin_sel > 0.5, jnp.sin(emb), jnp.cos(emb))


def sinusoidal_pos_emb(
    x: jax.Array,
    dim: int,
    *,
    max_tile_rows: int = 8192,
    target_tile_bytes: int = 2 << 20,
) -> jax.Array:
    """x: (B,) array of timesteps -> (B, dim) sinusoidal embedding (float32)."""
    assert dim % 2 == 0, "dim must be even"
    # PyTorch's module divides by (half_dim - 1); dim == 2 would produce inf/nan.
    assert dim >= 4, "dim must be >= 4 (half_dim - 1 would be zero otherwise)"

    half = dim // 2
    B = x.shape[0]
    x_f32 = x.astype(jnp.float32)

    # --- resident tables (computed once, kept in VMEM across all grid steps) --
    scale = math.log(10000.0) / (half - 1)
    freqs = jnp.exp(jnp.arange(half, dtype=jnp.float32) * (-scale))        # (half,)
    freqs_full = jnp.concatenate([freqs, freqs])                           # (dim,)
    sin_mask = jnp.concatenate([jnp.ones((half,), jnp.float32),
                                jnp.zeros((half,), jnp.float32)])          # (dim,)

    # --- lane-dense repack for narrow dims ------------------------------------
    if dim < 128 and (128 % dim == 0) and (B % (128 // dim) == 0):
        g = 128 // dim
    else:
        g = 1
    L = g * dim
    rows = B // g

    freqs_row = jnp.tile(freqs_full, (g,))                                 # (L,)
    sin_row = jnp.tile(sin_mask, (g,))                                     # (L,)
    grp_row = (jnp.arange(L, dtype=jnp.int32) // dim).astype(jnp.float32)  # (L,)
    table = jnp.stack([freqs_row, sin_row, grp_row], axis=0)               # (3, L)

    x_packed = x_f32.reshape(rows, g)                                      # (rows, g)

    # --- dim-aware row tile ----------------------------------------------------
    # Target ~2 MiB per output buffer; with double-buffered in+out this stays
    # comfortably under v5e's 16 MiB scoped-VMEM default (the (tb, g) x block
    # lane-pads to 128, i.e. costs tb * 512 B per buffer).
    tb = max(8, target_tile_bytes // (4 * L))
    tb = min(tb, max_tile_rows)
    tb = (tb // 8) * 8                      # sublane-aligned
    if tb >= rows:
        tb = rows                           # block == full array dim: allowed
    grid = (pl.cdiv(rows, tb),)

    cost = pl.CostEstimate(
        flops=3 * B * dim,
        transcendentals=2 * B * dim,        # sin + cos over the full width
        bytes_accessed=4 * (B * dim + B + 3 * L),
    )

    out = pl.pallas_call(
        functools.partial(_pos_emb_kernel, g=g),
        out_shape=jax.ShapeDtypeStruct((rows, L), jnp.float32),
        grid=grid,
        in_specs=[
            pl.BlockSpec((tb, g), lambda i: (i, 0)),     # packed x tile
            pl.BlockSpec((3, L), lambda i: (0, 0)),      # resident table
        ],
        out_specs=pl.BlockSpec((tb, L), lambda i: (i, 0)),
        compiler_params=pltpu.CompilerParams(
            # "parallel" lets the grid shard across TensorCores where supported.
            dimension_semantics=("parallel",),
        ),
        cost_estimate=cost,
    )(x_packed, table)

    # Packed view -> original view: identical row-major bytes, free reshape.
    return out.reshape(B, dim)


def _reference(x: jax.Array, dim: int) -> jax.Array:
    half_dim = dim // 2
    emb = math.log(10000.0) / (half_dim - 1)
    emb = jnp.exp(jnp.arange(half_dim, dtype=jnp.float32) * -emb)
    emb = x.astype(jnp.float32)[:, None] * emb[None, :]
    return jnp.concatenate([jnp.sin(emb), jnp.cos(emb)], axis=-1)


if __name__ == "__main__":
    key = jax.random.PRNGKey(0)

    # Small shapes consistent with the module (timestep embedding of a diffusion
    # policy): batch of timesteps, dim = 32.
    B, DIM = 8, 32
    x = jax.random.uniform(key, (B,), dtype=jnp.float32, minval=0.0, maxval=1000.0)
    out = jax.block_until_ready(sinusoidal_pos_emb(x, DIM))
    assert out.shape == (B, DIM)
    assert jnp.allclose(out, _reference(x, DIM), atol=1e-5, rtol=1e-5)

    # Multi-step grid on the lane-dense packed (dim < 128) path.
    x_big = jax.random.uniform(key, (4096,), dtype=jnp.float32,
                               minval=0.0, maxval=1000.0)
    out_big = jax.block_until_ready(
        sinusoidal_pos_emb(x_big, DIM, max_tile_rows=256))
    assert jnp.allclose(out_big, _reference(x_big, DIM), atol=1e-5, rtol=1e-5)

    # Unpacked (dim >= 128) single full-width store path.
    x_wide = jax.random.uniform(key, (64,), dtype=jnp.float32,
                                minval=0.0, maxval=1000.0)
    out_wide = jax.block_until_ready(sinusoidal_pos_emb(x_wide, 256))
    assert jnp.allclose(out_wide, _reference(x_wide, 256), atol=1e-5, rtol=1e-5)

    print("KERNEL_OK")
</pallas_src>

<mosaic_0001>
module attributes {stable_mosaic.version = 11 : i64} {
  func.func @_pos_emb_kernel(%arg0: i32, %arg1: memref<2x4xf32, #tpu.memory_space<vmem>>, %arg2: memref<3x128xf32, #tpu.memory_space<vmem>>, %arg3: memref<2x128xf32, #tpu.memory_space<vmem>>) attributes {dimension_semantics = [#tpu.dimension_semantics<parallel>], iteration_bounds = array<i64: 1>, scalar_prefetch = 0 : i64, scratch_operands = 0 : i64, tpu.core_type = #tpu.core_type<tc>, window_params = [{transform_indices = @transform_0, window_bounds = array<i64: 2, 4>}, {pipeline_mode = #tpu.pipeline_mode<synchronous>, transform_indices = @transform_1, window_bounds = array<i64: 3, 128>}, {transform_indices = @transform_2, window_bounds = array<i64: 2, 128>}]} {
    %c0 = arith.constant 0 : index
    %c0_0 = arith.constant 0 : index
    %0 = vector.load %arg2[%c0, %c0_0] : memref<3x128xf32, #tpu.memory_space<vmem>>, vector<1x128xf32>
    %c1 = arith.constant 1 : index
    %c0_1 = arith.constant 0 : index
    %1 = vector.load %arg2[%c1, %c0_1] : memref<3x128xf32, #tpu.memory_space<vmem>>, vector<1x128xf32>
    %c0_2 = arith.constant 0 : index
    %c0_3 = arith.constant 0 : index
    %2 = vector.load %arg1[%c0_2, %c0_3] : memref<2x4xf32, #tpu.memory_space<vmem>>, vector<2x1xf32>
    %c2 = arith.constant 2 : index
    %c0_4 = arith.constant 0 : index
    %3 = vector.load %arg2[%c2, %c0_4] : memref<3x128xf32, #tpu.memory_space<vmem>>, vector<1x128xf32>
    %cst = arith.constant 1.000000e+00 : f32
    %4 = vector.broadcast %cst : f32 to vector<1x128xf32>
    %5 = arith.cmpf oeq, %3, %4 : vector<1x128xf32>
    %c0_5 = arith.constant 0 : index
    %c1_6 = arith.constant 1 : index
    %6 = vector.load %arg1[%c0_5, %c1_6] : memref<2x4xf32, #tpu.memory_space<vmem>>, vector<2x1xf32>
    %7 = vector.shape_cast %5 : vector<1x128xi1> to vector<1x128xi1>
    %8 = vector.broadcast %7 : vector<1x128xi1> to vector<2x128xi1>
    %9 = vector.shape_cast %6 : vector<2x1xf32> to vector<2x1xf32>
    %10 = vector.broadcast %9 : vector<2x1xf32> to vector<2x128xf32>
    %11 = vector.shape_cast %2 : vector<2x1xf32> to vector<2x1xf32>
    %12 = vector.broadcast %11 : vector<2x1xf32> to vector<2x128xf32>
    %13 = arith.select %8, %10, %12 : vector<2x128xi1>, vector<2x128xf32>
    %cst_7 = arith.constant 2.000000e+00 : f32
    %14 = vector.broadcast %cst_7 : f32 to vector<1x128xf32>
    %15 = arith.cmpf oeq, %3, %14 : vector<1x128xf32>
    %c0_8 = arith.constant 0 : index
    %c2_9 = arith.constant 2 : index
    %16 = vector.load %arg1[%c0_8, %c2_9] : memref<2x4xf32, #tpu.memory_space<vmem>>, vector<2x1xf32>
    %17 = vector.shape_cast %15 : vector<1x128xi1> to vector<1x128xi1>
    %18 = vector.broadcast %17 : vector<1x128xi1> to vector<2x128xi1>
    %19 = vector.shape_cast %16 : vector<2x1xf32> to vector<2x1xf32>
    %20 = vector.broadcast %19 : vector<2x1xf32> to vector<2x128xf32>
    %21 = arith.select %18, %20, %13 : vector<2x128xi1>, vector<2x128xf32>
    %cst_10 = arith.constant 3.000000e+00 : f32
    %22 = vector.broadcast %cst_10 : f32 to vector<1x128xf32>
    %23 = arith.cmpf oeq, %3, %22 : vector<1x128xf32>
    %c0_11 = arith.constant 0 : index
    %c3 = arith.constant 3 : index
    %24 = vector.load %arg1[%c0_11, %c3] : memref<2x4xf32, #tpu.memory_space<vmem>>, vector<2x1xf32>
    %25 = vector.shape_cast %23 : vector<1x128xi1> to vector<1x128xi1>
    %26 = vector.broadcast %25 : vector<1x128xi1> to vector<2x128xi1>
    %27 = vector.shape_cast %24 : vector<2x1xf32> to vector<2x1xf32>
    %28 = vector.broadcast %27 : vector<2x1xf32> to vector<2x128xf32>
    %29 = arith.select %26, %28, %21 : vector<2x128xi1>, vector<2x128xf32>
    %30 = vector.broadcast %0 : vector<1x128xf32> to vector<2x128xf32>
    %31 = arith.mulf %29, %30 : vector<2x128xf32>
    %cst_12 = arith.constant 5.000000e-01 : f32
    %32 = vector.broadcast %cst_12 : f32 to vector<1x128xf32>
    %33 = arith.cmpf ogt, %1, %32 : vector<1x128xf32>
    %34 = math.sin %31 : vector<2x128xf32>
    %35 = math.cos %31 : vector<2x128xf32>
    %36 = vector.shape_cast %33 : vector<1x128xi1> to vector<1x128xi1>
    %37 = vector.broadcast %36 : vector<1x128xi1> to vector<2x128xi1>
    %38 = arith.select %37, %34, %35 : vector<2x128xi1>, vector<2x128xf32>
    %c0_13 = arith.constant 0 : index
    %c0_14 = arith.constant 0 : index
    %39 = vector.load %arg3[%c0_13, %c0_14] : memref<2x128xf32, #tpu.memory_space<vmem>>, vector<2x128xf32>
    tpu.vector_store %arg3[%c0_13, %c0_14], %38 {strides = array<i32>} : memref<2x128xf32, #tpu.memory_space<vmem>>, vector<2x128xf32>,
    return
  }
  func.func @transform_0(%arg0: i32) -> (i32, i32) {
    %c0_i32 = arith.constant 0 : i32
    %c0_i32_0 = arith.constant 0 : i32
    return %arg0, %c0_i32 : i32, i32
  }
  func.func @transform_1(%arg0: i32) -> (i32, i32) {
    %c0_i32 = arith.constant 0 : i32
    %c0_i32_0 = arith.constant 0 : i32
    %c0_i32_1 = arith.constant 0 : i32
    return %c0_i32, %c0_i32_0 : i32, i32
  }
  func.func @transform_2(%arg0: i32) -> (i32, i32) {
    %c0_i32 = arith.constant 0 : i32
    %c0_i32_0 = arith.constant 0 : i32
    return %arg0, %c0_i32 : i32, i32
  }
}

</mosaic_0001>

<llo_original>
// kernel: tpu_custom_call.1
$region0: #{tpu_custom_call.1}
  #allocation0 [shape = 'u32[]', space=smem, size = 0x4, offset = 0x4, fixed_abs, tag = 'smem constant byte address 0x4 - core index']
  #allocation1 [shape = 'u32[72,128]{1,0:T(1,128)}', space=vmem, size = 0x9000, scoped, tag = 'internal scratch']
  %s0 = inlined_call_operand.hbm [shape: f32[2,4], index: 0, kind: input, shape index: {}]
  %s1 = inlined_call_operand.hbm [shape: f32[3,128], index: 1, kind: input, shape index: {}]
  %s2 = inlined_call_operand.hbm [shape: f32[2,128], index: 2, kind: output, shape index: {}]
  %s3 = sld [smem:[#allocation0]]
  $region26: #{tpu_custom_call.1} parent=0
    _
  %s5 = ssub.s32 1, %s3
  %s6 = scalar_select 0, %s5, %s3
  $region1: #{tpu_custom_call.1} parent=0
    #allocation2 [shape = 'u8[1024]{0}', space=vmem, size = 0x400, scoped, tag = 'input window, operand 0, single buffered']
    #allocation3 [shape = 's32[1]{0}', space=sflag, size = 0x4, scoped, tag = 'scoped memory for tpu_custom_call.1']
    #allocation4 [shape = 's32[1]{0}', space=sflag, size = 0x4, scoped, tag = 'scoped memory for tpu_custom_call.1']
    #allocation5 [shape = 'u8[2048]{0}', space=vmem, size = 0x800, scoped, tag = 'input window, operand 1, single buffered']
    #allocation6 [shape = 's32[1]{0}', space=sflag, size = 0x4, scoped, tag = 'scoped memory for tpu_custom_call.1']
    #allocation7 [shape = 'u8[1024]{0}', space=vmem, size = 0x400, scoped, tag = 'output window, operand 0, single buffered']
    %7 = vsyncpa [#allocation3], 0
    %8 = vsyncpa [#allocation6], 0
    %9 = vsyncpa [#allocation4], 0
    // Predicated region
    $region2: #{tpu_custom_call.1} parent=1 // pred_check
      _
    $region3: #{tpu_custom_call.1} parent=1 // pred_check_branch
      %11 = sbr.rel (0) target = $region5
    $region4: #{tpu_custom_call.1} parent=1 // pred_region
      %13 = vsyncadd [#allocation3], 0
      %s15 = sshll.u32 %s0, 4
      %s16 = int_to_ptr.hbm [resolvable:$true] %s15
      %s17 = sshll.u32 [#allocation2], 4
      %s18 = int_to_ptr.vmem [resolvable:$true] %s17
      %20 = dma.hbm_to_vmem [thread:$0]  %s16, 32, %s18, [#allocation3]
    $region5: #{tpu_custom_call.1} parent=1 // pred_fallthru
      _
    // Predicated region
    $region6: #{tpu_custom_call.1} parent=1 // pred_check
      _
    $region7: #{tpu_custom_call.1} parent=1 // pred_check_branch
      %22 = sbr.rel (0) target = $region9
    $region8: #{tpu_custom_call.1} parent=1 // pred_region
      %24 = vsyncadd [#allocation6], 0
      %s26 = sshll.u32 %s1, 4
      %s27 = int_to_ptr.hbm [resolvable:$true] %s26
      %s28 = sshll.u32 [#allocation5], 4
      %s29 = int_to_ptr.vmem [resolvable:$true] %s28
      %31 = dma.hbm_to_vmem [thread:$0]  %s27, 64, %s29, [#allocation6]
    $region9: #{tpu_custom_call.1} parent=1 // pred_fallthru
      _
    // Predicated region
    $region10: #{tpu_custom_call.1} parent=1 // pred_check
      _
    $region11: #{tpu_custom_call.1} parent=1 // pred_check_branch
      %33 = sbr.rel (0) target = $region13
    $region12: #{tpu_custom_call.1} parent=1 // pred_region
      %35 = dma.done [#allocation3], 32
    $region13: #{tpu_custom_call.1} parent=1 // pred_fallthru
      _
    // Predicated region
    $region14: #{tpu_custom_call.1} parent=1 // pred_check
      _
    $region15: #{tpu_custom_call.1} parent=1 // pred_check_branch
      %37 = sbr.rel (0) target = $region17
    $region16: #{tpu_custom_call.1} parent=1 // pred_region
      %39 = dma.done [#allocation6], 64
    $region17: #{tpu_custom_call.1} parent=1 // pred_fallthru
      _
    %v40 = vld [vmem:[#allocation5] sm:$0x1]
    %v41 = vld [vmem:[#allocation5 + $0x1] sm:$0x1]
    %v42 = vld [vmem:[#allocation2] sm:$0x3]
    %v43 = vld [vmem:[#allocation5 + $0x2] sm:$0x1]
    %vm44 = vcmp.eq.f32.partialorder %v43, 1.0
    %v45 = vsel %vm44, 1, 0
    %v46 = vperm.slane %v45, 0
    %vm47 = vcmp.eq.s32.totalorder %v46, 1
    %49 = vset.pattern.permute.xlu0 1
    %50 = vperm.xlu0 %49, %v42
    %v51 = vpop.permute.xlu0 %50
    %53 = vset.pattern.permute.xlu0 0
    %54 = vperm.xlu0 %53, %v42
    %v55 = vpop.permute.xlu0 %54
    %v57 = vsel %vm47, %v51, %v55
    %vm58 = vcmp.eq.f32.partialorder %v43, 2.0
    %v59 = vsel %vm58, 1, 0
    %v60 = vperm.slane %v59, 0
    %vm61 = vcmp.eq.s32.totalorder %v60, 1
    %62 = vset.pattern.permute.xlu0 2
    %63 = vperm.xlu0 %62, %v42
    %v64 = vpop.permute.xlu0 %63
    %v66 = vsel %vm61, %v64, %v57
    %vm67 = vcmp.eq.f32.partialorder %v43, 3.0
    %v68 = vsel %vm67, 1, 0
    %v69 = vperm.slane %v68, 0
    %vm70 = vcmp.eq.s32.totalorder %v69, 1
    %71 = vset.pattern.permute.xlu0 3
    %72 = vperm.xlu0 %71, %v42
    %v73 = vpop.permute.xlu0 %72
    %v75 = vsel %vm70, %v73, %v66
    %v76 = vperm.slane %v40, 0
    %v77 = vmul.f32 %v75, %v76
    %vm78 = vcmp.gt.f32.partialorder %v41, 0.5
    %v79 = vand.u32 2147483647, %v77
    %vm80 = vcmp.le.f32.partialorder %v79, 0.7853982
    %vm81 = vcmp.lt.s32.totalorder %v77, 0
    %v82 = vand.u32 %v77, 2139095040
    %v83 = vshrl.u32 %v82, 23
    %v84 = vsub.s32 %v83, 127
    %v85 = vand.u32 2147483647, %v77
    %v86 = vand.u32 %v85, 8388607
    %v87 = vor.u32 %v86, 8388608
    %v88 = vsub.s32 0, %v87
    %v89 = vadd.s32 %v84, 1
    %vm90 = vcmp.gt.s32.totalorder %v89, 0
    %v91 = vsel %vm90, %v89, 0
    %v92 = vshrl.u32 %v91, 5
    %v93 = vand.u32 %v91, 31
    %v94 = vsub.s32 32, %v93
    %v95 = vshrl.u32 683565275, %v94
    %v96 = vshll.u32 683565275, %v93
    %v97 = vshrl.u32 2475754826, %v94
    %v98 = vor.u32 %v96, %v97
    %v99 = vshll.u32 2475754826, %v93
    %v100 = vshrl.u32 2131351028, %v94
    %v101 = vor.u32 %v99, %v100
    %v102 = vshll.u32 2131351028, %v93
    %v103 = vshrl.u32 2102212464, %v94
    %v104 = vor.u32 %v102, %v103
    %v105 = vshll.u32 2102212464, %v93
    %v106 = vshrl.u32 920167782, %v94
    %v107 = vor.u32 %v105, %v106
    %v108 = vshll.u32 920167782, %v93
    %v109 = vshrl.u32 1326507024, %v94
    %v110 = vor.u32 %v108, %v109
    %vm111 = vcmp.lt.s32.totalorder %v92, 1
    %vm112 = vcmp.lt.s32.totalorder %v92, 2
    %vm113 = vcmp.lt.s32.totalorder %v92, 3
    %vm114 = vcmp.lt.s32.totalorder %v92, 4
    %v115 = vsel %vm111, %v95, %v98
    %v116 = vsel %vm114, %v104, 2102212464
    %v117 = vsel %vm113, %v101, %v116
    %v118 = vsel %vm112, %v115, %v117
    %v119 = vsel %vm111, %v98, %v101
    %v120 = vsel %vm114, %v107, 920167782
    %v121 = vsel %vm113, %v104, %v120
    %v122 = vsel %vm112, %v119, %v121
    %v123 = vsel %vm111, %v101, %v104
    %v124 = vsel %vm114, %v110, 1326507024
    %v125 = vsel %vm113, %v107, %v124
    %v126 = vsel %vm112, %v123, %v125
    %v127 = vshll.u32 %v87, 8
    %v128 = vand.u32 %v127, 65535
    %v129 = vshrl.u32 %v127, 16
    %v130 = vand.u32 %v126, 65535
    %v131 = vshrl.u32 %v126, 16
    %v132 = vmul.u32 %v128, %v130
    %v133 = vmul.u32 %v128, %v131
    %v134 = vmul.u32 %v129, %v130
    %v135 = vmul.u32 %v129, %v131
    %v136 = vshll.u32 %v133, 16
    %v137 = vshrl.u32 %v133, 16
    %v138 = vshll.u32 %v134, 16
    %v139 = vshrl.u32 %v134, 16
    %vm140 = vc.u32 %v132, %v136
    %v141 = vsel %vm140, 1, 0
    %v142 = vadd.s32 %v132, %v136
    %v143 = vadd.s32 %v135, %v141
    %vm144 = vc.u32 %v142, %v138
    %v145 = vsel %vm144, 1, 0
    %v146 = vadd.s32 %v142, %v138
    %v147 = vadd.s32 %v143, %v145
    %v148 = vadd.s32 %v147, %v137
    %v149 = vadd.s32 %v148, %v139
    %v150 = vand.u32 %v127, 65535
    %v151 = vshrl.u32 %v127, 16
    %v152 = vand.u32 %v122, 65535
    %v153 = vshrl.u32 %v122, 16
    %v154 = vmul.u32 %v150, %v152
    %v155 = vmul.u32 %v150, %v153
    %v156 = vmul.u32 %v151, %v152
    %v157 = vmul.u32 %v151, %v153
    %v158 = vshll.u32 %v155, 16
    %v159 = vshrl.u32 %v155, 16
    %v160 = vshll.u32 %v156, 16
    %v161 = vshrl.u32 %v156, 16
    %vm162 = vc.u32 %v154, %v158
    %v163 = vsel %vm162, 1, 0
    %v164 = vadd.s32 %v154, %v158
    %v165 = vadd.s32 %v157, %v163
    %vm166 = vc.u32 %v164, %v160
    %v167 = vsel %vm166, 1, 0
    %v168 = vadd.s32 %v164, %v160
    %v169 = vadd.s32 %v165, %v167
    %v170 = vadd.s32 %v169, %v159
    %v171 = vadd.s32 %v170, %v161
    %v172 = vmul.u32 %v127, %v118
    %v173 = vadd.s32 %v149, %v168
    %vm174 = vc.u32 %v149, %v168
    %v175 = vadd.s32 %v171, 1
    %v176 = vsel %vm174, %v175, %v171
    %v177 = vadd.s32 %v172, %v176
    %v178 = vadd.s32 %v177, 536870912
    %v179 = vshrl.u32 %v178, 30
    %v180 = vshll.u32 %v179, 30
    %v181 = vsub.s32 %v177, %v180
    %vm182 = vcmp.lt.s32.totalorder %v181, 0
    %v183 = vsub.s32 0, %v181
    %v184 = vsel %vm182, %v183, %v181
    %v185 = vclz %v184
    %v186 = vsub.s32 %v185, 2
    %vm187 = vcmp.gt.s32.totalorder 0, %v186
    %v188 = vsel %vm187, 0, %v186
    %v189 = vsub.s32 32, %v188
    %v190 = vshll.u32 %v181, %v188
    %v191 = vshrl.u32 %v173, %v189
    %v192 = vor.u32 %v190, %v191
    %v193 = vsub.s32 4294967266, %v188
    %v194 = vadd.s32 %v193, 127
    %v195 = vshll.u32 %v194, 23
    %v196 = vor.u32 4788187, %v195
    %v197 = vand.u32 2147483647, %v196
    %v199 = vcvt.s32.f32 %v192
    %v200 = vmul.f32 %v199, %v197
    %v201 = vxor.u32 %v200, 2147483648
    %v202 = vsel %vm81, %v201, %v200
    %v203 = vsub.s32 4, %v179
    %v204 = vsel %vm81, %v203, %v179
    %v205 = vsel %vm80, %v77, %v202
    %v206 = vsel %vm80, 0, %v204
    %v207 = vmul.f32 %v205, %v205
    %v208 = vmul.f32 %v207, -0.001358992
    %v209 = vadd.f32 %v208, 0.041655596
    %v210 = vmul.f32 %v207, %v209
    %v211 = vadd.f32 %v210, -0.4999988
    %v212 = vmul.f32 %v207, %v211
    %v213 = vadd.f32 1.0, %v212
    %v214 = vmul.f32 %v205, %v205
    %v215 = vmul.f32 %v214, -0.00019511016
    %v216 = vadd.f32 %v215, 0.008332121
    %v217 = vmul.f32 %v214, %v216
    %v218 = vadd.f32 %v217, -0.16666654
    %v219 = vmul.f32 %v214, %v218
    %v220 = vadd.f32 %v219, 1.0
    %v221 = vmul.f32 %v220, %v205
    %vm222 = vweird.f32 %v77
    %v223 = vadd.s32 %v206, 3
    %v224 = vand.u32 %v223, 3
    %vm225 = vcmp.lt.s32.totalorder %v224, 2
    %vm226 = vcmp.eq.s32.totalorder %v224, 0
    %v227 = vxor.u32 %v221, 2147483648
    %v228 = vsel %vm226, %v213, %v227
    %vm229 = vcmp.eq.s32.totalorder %v224, 2
    %v230 = vxor.u32 %v213, 2147483648
    %v231 = vsel %vm229, %v230, %v221
    %v232 = vsel %vm225, %v228, %v231
    %v233 = vsel %vm222, nan, %v232
    %v234 = vand.u32 2147483647, %v77
    %vm235 = vcmp.le.f32.partialorder %v234, 0.7853982
    %vm236 = vcmp.lt.s32.totalorder %v77, 0
    %v237 = vand.u32 %v77, 2139095040
    %v238 = vshrl.u32 %v237, 23
    %v239 = vsub.s32 %v238, 127
    %v240 = vand.u32 2147483647, %v77
    %v241 = vand.u32 %v240, 8388607
    %v242 = vor.u32 %v241, 8388608
    %v243 = vsub.s32 0, %v242
    %v244 = vadd.s32 %v239, 1
    %vm245 = vcmp.gt.s32.totalorder %v244, 0
    %v246 = vsel %vm245, %v244, 0
    %v247 = vshrl.u32 %v246, 5
    %v248 = vand.u32 %v246, 31
    %v249 = vsub.s32 32, %v248
    %v250 = vshrl.u32 683565275, %v249
    %v251 = vshll.u32 683565275, %v248
    %v252 = vshrl.u32 2475754826, %v249
    %v253 = vor.u32 %v251, %v252
    %v254 = vshll.u32 2475754826, %v248
    %v255 = vshrl.u32 2131351028, %v249
    %v256 = vor.u32 %v254, %v255
    %v257 = vshll.u32 2131351028, %v248
    %v258 = vshrl.u32 2102212464, %v249
    %v259 = vor.u32 %v257, %v258
    %v260 = vshll.u32 2102212464, %v248
    %v261 = vshrl.u32 920167782, %v249
    %v262 = vor.u32 %v260, %v261
    %v263 = vshll.u32 920167782, %v248
    %v264 = vshrl.u32 1326507024, %v249
    %v265 = vor.u32 %v263, %v264
    %vm266 = vcmp.lt.s32.totalorder %v247, 1
    %vm267 = vcmp.lt.s32.totalorder %v247, 2
    %vm268 = vcmp.lt.s32.totalorder %v247, 3
    %vm269 = vcmp.lt.s32.totalorder %v247, 4
    %v270 = vsel %vm266, %v250, %v253
    %v271 = vsel %vm269, %v259, 2102212464
    %v272 = vsel %vm268, %v256, %v271
    %v273 = vsel %vm267, %v270, %v272
    %v274 = vsel %vm266, %v253, %v256
    %v275 = vsel %vm269, %v262, 920167782
    %v276 = vsel %vm268, %v259, %v275
    %v277 = vsel %vm267, %v274, %v276
    %v278 = vsel %vm266, %v256, %v259
    %v279 = vsel %vm269, %v265, 1326507024
    %v280 = vsel %vm268, %v262, %v279
    %v281 = vsel %vm267, %v278, %v280
    %v282 = vshll.u32 %v242, 8
    %v283 = vand.u32 %v282, 65535
    %v284 = vshrl.u32 %v282, 16
    %v285 = vand.u32 %v281, 65535
    %v286 = vshrl.u32 %v281, 16
    %v287 = vmul.u32 %v283, %v285
    %v288 = vmul.u32 %v283, %v286
    %v289 = vmul.u32 %v284, %v285
    %v290 = vmul.u32 %v284, %v286
    %v291 = vshll.u32 %v288, 16
    %v292 = vshrl.u32 %v288, 16
    %v293 = vshll.u32 %v289, 16
    %v294 = vshrl.u32 %v289, 16
    %vm295 = vc.u32 %v287, %v291
    %v296 = vsel %vm295, 1, 0
    %v297 = vadd.s32 %v287, %v291
    %v298 = vadd.s32 %v290, %v296
    %vm299 = vc.u32 %v297, %v293
    %v300 = vsel %vm299, 1, 0
    %v301 = vadd.s32 %v297, %v293
    %v302 = vadd.s32 %v298, %v300
    %v303 = vadd.s32 %v302, %v292
    %v304 = vadd.s32 %v303, %v294
    %v305 = vand.u32 %v282, 65535
    %v306 = vshrl.u32 %v282, 16
    %v307 = vand.u32 %v277, 65535
    %v308 = vshrl.u32 %v277, 16
    %v309 = vmul.u32 %v305, %v307
    %v310 = vmul.u32 %v305, %v308
    %v311 = vmul.u32 %v306, %v307
    %v312 = vmul.u32 %v306, %v308
    %v313 = vshll.u32 %v310, 16
    %v314 = vshrl.u32 %v310, 16
    %v315 = vshll.u32 %v311, 16
    %v316 = vshrl.u32 %v311, 16
    %vm317 = vc.u32 %v309, %v313
    %v318 = vsel %vm317, 1, 0
    %v319 = vadd.s32 %v309, %v313
    %v320 = vadd.s32 %v312, %v318
    %vm321 = vc.u32 %v319, %v315
    %v322 = vsel %vm321, 1, 0
    %v323 = vadd.s32 %v319, %v315
    %v324 = vadd.s32 %v320, %v322
    %v325 = vadd.s32 %v324, %v314
    %v326 = vadd.s32 %v325, %v316
    %v327 = vmul.u32 %v282, %v273
    %v328 = vadd.s32 %v304, %v323
    %vm329 = vc.u32 %v304, %v323
    %v330 = vadd.s32 %v326, 1
    %v331 = vsel %vm329, %v330, %v326
    %v332 = vadd.s32 %v327, %v331
    %v333 = vadd.s32 %v332, 536870912
    %v334 = vshrl.u32 %v333, 30
    %v335 = vshll.u32 %v334, 30
    %v336 = vsub.s32 %v332, %v335
    %vm337 = vcmp.lt.s32.totalorder %v336, 0
    %v338 = vsub.s32 0, %v336
    %v339 = vsel %vm337, %v338, %v336
    %v340 = vclz %v339
    %v341 = vsub.s32 %v340, 2
    %vm342 = vcmp.gt.s32.totalorder 0, %v341
    %v343 = vsel %vm342, 0, %v341
    %v344 = vsub.s32 32, %v343
    %v345 = vshll.u32 %v336, %v343
    %v346 = vshrl.u32 %v328, %v344
    %v347 = vor.u32 %v345, %v346
    %v348 = vsub.s32 4294967266, %v343
    %v349 = vadd.s32 %v348, 127
    %v350 = vshll.u32 %v349, 23
    %v351 = vor.u32 4788187, %v350
    %v352 = vand.u32 2147483647, %v351
    %v354 = vcvt.s32.f32 %v347
    %v355 = vmul.f32 %v354, %v352
    %v356 = vxor.u32 %v355, 2147483648
    %v357 = vsel %vm236, %v356, %v355
    %v358 = vsub.s32 4, %v334
    %v359 = vsel %vm236, %v358, %v334
    %v360 = vsel %vm235, %v77, %v357
    %v361 = vsel %vm235, 0, %v359
    %v362 = vmul.f32 %v360, %v360
    %v363 = vmul.f32 %v362, -0.001358992
    %v364 = vadd.f32 %v363, 0.041655596
    %v365 = vmul.f32 %v362, %v364
    %v366 = vadd.f32 %v365, -0.4999988
    %v367 = vmul.f32 %v362, %v366
    %v368 = vadd.f32 1.0, %v367
    %v369 = vmul.f32 %v360, %v360
    %v370 = vmul.f32 %v369, -0.00019511016
    %v371 = vadd.f32 %v370, 0.008332121
    %v372 = vmul.f32 %v369, %v371
    %v373 = vadd.f32 %v372, -0.16666654
    %v374 = vmul.f32 %v369, %v373
    %v375 = vadd.f32 %v374, 1.0
    %v376 = vmul.f32 %v375, %v360
    %vm377 = vweird.f32 %v77
    %v378 = vand.u32 %v361, 3
    %vm379 = vcmp.lt.s32.totalorder %v378, 2
    %vm380 = vcmp.eq.s32.totalorder %v378, 0
    %v381 = vxor.u32 %v376, 2147483648
    %v382 = vsel %vm380, %v368, %v381
    %vm383 = vcmp.eq.s32.totalorder %v378, 2
    %v384 = vxor.u32 %v368, 2147483648
    %v385 = vsel %vm383, %v384, %v376
    %v386 = vsel %vm379, %v382, %v385
    %v387 = vsel %vm377, nan, %v386
    %v388 = vsel %vm78, 1, 0
    %v389 = vperm.slane %v388, 0
    %vm390 = vcmp.eq.s32.totalorder %v389, 1
    %v391 = vsel %vm390, %v233, %v387
    %392 = vst [vmem:[#allocation7] sm:$0x3] %v391
    // Predicated region
    $region18: #{tpu_custom_call.1} parent=1 // pred_check
      _
    $region19: #{tpu_custom_call.1} parent=1 // pred_check_branch
      %394 = sbr.rel (0) target = $region21
    $region20: #{tpu_custom_call.1} parent=1 // pred_region
      %396 = vsyncadd [#allocation4], 0
      %s398 = sshll.u32 [#allocation7], 4
      %s399 = int_to_ptr.vmem [resolvable:$true] %s398
      %s400 = sshll.u32 %s2, 4
      %s401 = int_to_ptr.hbm [resolvable:$true] %s400
      %403 = dma.vmem_to_hbm [thread:$0]  %s399, 32, %s401, [#allocation4]
    $region21: #{tpu_custom_call.1} parent=1 // pred_fallthru
      _
    // Predicated region
    $region22: #{tpu_custom_call.1} parent=1 // pred_check
      _
    $region23: #{tpu_custom_call.1} parent=1 // pred_check_branch
      %405 = sbr.rel (0) target = $region25
    $region24: #{tpu_custom_call.1} parent=1 // pred_region
      %407 = dma.done [#allocation4], 32
    $region25: #{tpu_custom_call.1} parent=1 // pred_fallthru
      _
    %408 = vsyncpa [#allocation3], 1
    %409 = vsyncpa [#allocation6], 1
    %410 = vsyncpa [#allocation4], 1

</llo_original>
